<compile_context>
chip_gen: v6e
topology: v6e:2x2x1
jax: 0.10.0
libtpu: 0.0.40
codegen_flags: <defaults>
</compile_context>

<pallas_src>
import functools

import jax
import jax.numpy as jnp
from jax.experimental import pallas as pl
from jax.experimental.pallas import tpu as pltpu


def _round_up(x, m):
    return (x + m - 1) // m * m


def _cdiv(a, b):
    return -(-a // b)


def _apply_act(y, act):
    if act == "relu":
        return jnp.maximum(y, 0.0)
    if act == "lrelu":
        return jnp.where(y > 0, y, 0.02 * y)
    if act == "sigmoid":
        return jax.nn.sigmoid(y)
    return y  # identity


# ----------------------------------------------------------------------------
# fc_dec: single-pass fused matmul + bias (K and N are tiny -> one block).
# ----------------------------------------------------------------------------
def _fc_kernel(z_ref, w_ref, b_ref, o_ref):
    o_ref[...] = (jnp.dot(z_ref[...], w_ref[...],
                          preferred_element_type=jnp.float32)
                  + b_ref[...]).astype(o_ref.dtype)


def fc_dec(z, w_t, b_row):
    """z: (B, nlat), w_t: (nlat, N) pre-transposed, b_row: (1, N) -> (B, N)."""
    B, K = z.shape
    N = w_t.shape[1]
    return pl.pallas_call(
        _fc_kernel,
        out_shape=jax.ShapeDtypeStruct((B, N), jnp.float32),
        grid=(1,),
        in_specs=[
            pl.BlockSpec((B, K), lambda i: (0, 0)),
            pl.BlockSpec((K, N), lambda i: (0, 0)),
            pl.BlockSpec((1, N), lambda i: (0, 0)),
        ],
        out_specs=pl.BlockSpec((B, N), lambda i: (0, 0)),
    )(z, w_t, b_row)


# ----------------------------------------------------------------------------
# Upsample kernel (hoisted): xd[b] = U_pad @ x[b], row `vout` is the dummy 0.
# ----------------------------------------------------------------------------
def _upsample_kernel(x_ref, u_ref, o_ref):
    o_ref[...] = jnp.dot(u_ref[...], x_ref[...],
                         preferred_element_type=jnp.float32)


def upsample_level(x, lv):
    """x: (B, in_w, F_in) -> xd: (B, vdp, F_in) (padding rows are zero)."""
    B, in_w, f_in = x.shape
    vdp = lv["vdp"]
    return pl.pallas_call(
        _upsample_kernel,
        out_shape=jax.ShapeDtypeStruct((B, vdp, f_in), jnp.float32),
        grid=(B,),
        in_specs=[
            pl.BlockSpec((None, in_w, f_in), lambda b: (b, 0, 0)),
            pl.BlockSpec((vdp, in_w), lambda b: (0, 0)),
        ],
        out_specs=pl.BlockSpec((None, vdp, f_in), lambda b: (b, 0, 0)),
        compiler_params=pltpu.CompilerParams(
            dimension_semantics=("parallel",)),
    )(x, lv["u_pad"])


# ----------------------------------------------------------------------------
# SpiralConv kernel, vectorized gather path (preferred).
# ----------------------------------------------------------------------------
def _conv_kernel_vec(idx_ref, xd_ref, w_ref, b_ref, o_ref, *, S, f_in, act):
    """idx_ref: (tm, S) int32 VMEM block; xd_ref: (vdp, F_in) full mesh;
    w_ref: (S*F_in, F_out); b_ref: (1, F_out); o_ref: (tm, F_out)."""
    xd = xd_ref[...]                          # (vdp, f_in), VMEM-resident
    idx = idx_ref[...]                        # (tm, S) int32
    tm = o_ref.shape[0]
    parts = []
    for s in range(S):                        # S is small and static
        col = jnp.broadcast_to(idx[:, s:s + 1], (tm, f_in))
        parts.append(jnp.take_along_axis(xd, col, axis=0))   # (tm, f_in)
    flat = jnp.concatenate(parts, axis=1)     # (tm, S*f_in) lane-contiguous
    y = jnp.dot(flat, w_ref[...], preferred_element_type=jnp.float32)
    y = _apply_act(y + b_ref[...], act)
    o_ref[...] = y.astype(o_ref.dtype)


def conv_level_vec(xd, lv):
    B = xd.shape[0]
    S, f_in, f_out = lv["S"], lv["f_in"], lv["f_out"]
    tm, n_t, vdp = lv["tm"], lv["n_t"], lv["vdp"]
    K = S * f_in
    kernel = functools.partial(_conv_kernel_vec, S=S, f_in=f_in, act=lv["act"])
    return pl.pallas_call(
        kernel,
        out_shape=jax.ShapeDtypeStruct((B, n_t * tm, f_out), jnp.float32),
        grid=(B, n_t),
        in_specs=[
            pl.BlockSpec((tm, S), lambda b, t: (t, 0)),
            pl.BlockSpec((None, vdp, f_in), lambda b, t: (b, 0, 0)),
            pl.BlockSpec((K, f_out), lambda b, t: (0, 0)),
            pl.BlockSpec((1, f_out), lambda b, t: (0, 0)),
        ],
        out_specs=pl.BlockSpec((None, tm, f_out), lambda b, t: (b, t, 0)),
        compiler_params=pltpu.CompilerParams(
            dimension_semantics=("parallel", "parallel")),
    )(lv["idx_mat"], xd, lv["w_flat"], lv["b_row"])


# ----------------------------------------------------------------------------
# SpiralConv kernel, loop-gather fallback (if in-kernel gather can't lower).
# ----------------------------------------------------------------------------
def _conv_kernel_loop(spiral_ref, xd_ref, w_ref, b_ref, o_ref, slab_ref,
                      *, S, f_in, tm, act):
    t = pl.program_id(1)
    base = t * (tm * S)

    def body(v, carry):
        off = base + v * S
        for s in range(S):
            i = spiral_ref[off + s]
            slab_ref[pl.ds(v, 1), pl.ds(s * f_in, f_in)] = xd_ref[pl.ds(i, 1), :]
        return carry

    jax.lax.fori_loop(0, tm, body, 0)
    y = jnp.dot(slab_ref[...], w_ref[...], preferred_element_type=jnp.float32)
    y = _apply_act(y + b_ref[...], act)
    o_ref[...] = y.astype(o_ref.dtype)


def conv_level_loop(xd, lv):
    B = xd.shape[0]
    S, f_in, f_out = lv["S"], lv["f_in"], lv["f_out"]
    tm, n_t, vdp = lv["tm"], lv["n_t"], lv["vdp"]
    K = S * f_in
    kernel = functools.partial(_conv_kernel_loop, S=S, f_in=f_in, tm=tm,
                               act=lv["act"])
    return pl.pallas_call(
        kernel,
        out_shape=jax.ShapeDtypeStruct((B, n_t * tm, f_out), jnp.float32),
        grid_spec=pltpu.PrefetchScalarGridSpec(
            num_scalar_prefetch=1,
            grid=(B, n_t),
            in_specs=[
                pl.BlockSpec((None, vdp, f_in), lambda b, t, sp: (b, 0, 0)),
                pl.BlockSpec((K, f_out), lambda b, t, sp: (0, 0)),
                pl.BlockSpec((1, f_out), lambda b, t, sp: (0, 0)),
            ],
            out_specs=pl.BlockSpec((None, tm, f_out),
                                   lambda b, t, sp: (b, t, 0)),
            scratch_shapes=[pltpu.VMEM((tm, K), jnp.float32)],
        ),
        compiler_params=pltpu.CompilerParams(
            dimension_semantics=("parallel", "arbitrary")),
    )(lv["idx_flat"], xd, lv["w_flat"], lv["b_row"])


# ----------------------------------------------------------------------------
# Parameters (torch layout) and one-time packing into the kernel "plan".
# ----------------------------------------------------------------------------
def init_params(key, dec_filters, spirals, nlat, U):
    num_verts0 = U[-1].shape[1]
    n_layers = len(dec_filters) - 1
    ks = jax.random.split(key, 2 + 2 * n_layers)
    params = {
        "fc_w": 0.1 * jax.random.normal(
            ks[0], (num_verts0 * dec_filters[0], nlat), jnp.float32),
        "fc_b": 0.1 * jax.random.normal(
            ks[1], (num_verts0 * dec_filters[0],), jnp.float32),
        "layers": [],
    }
    for i in range(n_layers):
        S = spirals[-1 - i].shape[2]
        w = 0.1 * jax.random.normal(
            ks[2 + 2 * i], (dec_filters[i + 1], dec_filters[i] * S), jnp.float32)
        b = 0.1 * jax.random.normal(
            ks[3 + 2 * i], (dec_filters[i + 1],), jnp.float32)
        act = "relu" if i != n_layers - 1 else "identity"
        params["layers"].append((w, b, act))
    return params


def build_plan(params, dec_filters, spirals, U):
    """Pre-transpose / pre-pad / pack all static data once (init time)."""
    n_layers = len(dec_filters) - 1
    num_verts0 = U[-1].shape[1]
    plan = {
        "fc_wt": params["fc_w"].T.astype(jnp.float32),          # (nlat, V0*F0)
        "fc_b": params["fc_b"].astype(jnp.float32).reshape(1, -1),
        "num_verts0": num_verts0,
        "f0": dec_filters[0],
        "levels": [],
    }
    in_width = num_verts0          # padded vertex count of the level's input
    for i in range(n_layers):
        w, b, act = params["layers"][i]
        f_in, f_out = dec_filters[i], dec_filters[i + 1]
        spiral = spirals[-1 - i]
        u = U[-1 - i]
        S = spiral.shape[2]
        vout, vin = u.shape
        vd = vout + 1                              # + dummy zero vertex
        vdp = _round_up(vd, 8)
        tm = min(512, vdp)                         # vertex tile (mult of 8)
        n_t = _cdiv(vdp, tm)
        rows = n_t * tm
        # Zero-padded upsample matrix: row `vout` is the dummy zero vertex;
        # zero columns >= vin kill the previous level's padding rows.
        u_pad = jnp.zeros((vdp, in_width), jnp.float32).at[:vout, :vin].set(u)
        # SpiralConv weight flattened to (S*F_in, F_out): one MXU matmul.
        w_flat = w.T.astype(jnp.float32)
        b_row = b.astype(jnp.float32).reshape(1, -1)
        # Spiral indices: -1 -> dummy vertex (index vout); pad rows -> dummy.
        idx = jnp.where(spiral[0] < 0, vout, spiral[0]).astype(jnp.int32)
        idx = jnp.pad(idx, ((0, rows - vd), (0, 0)), constant_values=vout)
        plan["levels"].append(dict(
            u_pad=u_pad, w_flat=w_flat, b_row=b_row,
            idx_mat=idx, idx_flat=idx.reshape(-1),
            act=act, S=S, f_in=f_in, f_out=f_out,
            tm=tm, n_t=n_t, vdp=vdp, vout=vout))
        in_width = rows
    return plan


def spiral_decoder_forward(plan, zs, zp, *, vectorized_gather=True):
    B = zs.shape[0]
    z = jnp.concatenate([zs, zp], axis=1)
    x = fc_dec(z, plan["fc_wt"], plan["fc_b"])
    x = x.reshape(B, plan["num_verts0"], plan["f0"])
    conv = conv_level_vec if vectorized_gather else conv_level_loop
    vout = plan["num_verts0"]
    for lv in plan["levels"]:
        xd = upsample_level(x, lv)     # (B, vdp, F_in); row vout == zero dummy
        x = conv(xd, lv)               # padding rows killed by next u_pad / slice
        vout = lv["vout"]
    return x[:, :vout, :]


# ----------------------------------------------------------------------------
# Pure-JAX reference (for correctness check)
# ----------------------------------------------------------------------------
def reference_forward(params, zs, zp, dec_filters, spirals, U):
    hp = jax.lax.Precision.HIGHEST
    B = zs.shape[0]
    z = jnp.concatenate([zs, zp], axis=1)
    x = jnp.dot(z, params["fc_w"].T, precision=hp) + params["fc_b"]
    x = x.reshape(B, -1, dec_filters[0])
    for i, (w, b, act) in enumerate(params["layers"]):
        x = jnp.einsum("oi,bif->bof", U[-i - 1], x, precision=hp)
        Bv, V, F = x.shape
        spiral = spirals[-1 - i]
        S = spiral.shape[2]
        x_dummy = jnp.concatenate([x, jnp.zeros((Bv, 1, F), x.dtype)], axis=1)
        idx = jnp.where(spiral[0] < 0, V, spiral[0])
        flat = jnp.take(x_dummy, idx, axis=1).reshape(Bv * (V + 1), S * F)
        y = jnp.dot(flat, w.T, precision=hp) + b
        if act == "relu":
            y = jnp.maximum(y, 0.0)
        elif act == "lrelu":
            y = jnp.where(y > 0, y, 0.02 * y)
        elif act == "sigmoid":
            y = jax.nn.sigmoid(y)
        x = y.reshape(Bv, V + 1, w.shape[0])[:, :-1, :]
    return x


# ----------------------------------------------------------------------------
if __name__ == "__main__":
    key = jax.random.PRNGKey(0)
    ks = jax.random.split(key, 8)

    # Small synthetic mesh hierarchy.
    B = 2
    nlat_s, nlat_p = 8, 8
    nlat = nlat_s + nlat_p
    dec_filters = [32, 16, 3]          # 2 SpiralConv layers, last is identity
    V0, V1, V2 = 8, 16, 32             # verts: coarsest -> finest
    S = 9                              # spiral length

    # Upsampling matrices: U[-1] used first.  U[-1]: (V1, V0), U[-2]: (V2, V1).
    U2 = 0.1 * jax.random.normal(ks[0], (V2, V1), jnp.float32)
    U1 = 0.1 * jax.random.normal(ks[1], (V1, V0), jnp.float32)
    U = [U2, U1]

    # Spiral index tensors, shape (1, V+1, S), entries in [-1, V-1]
    # (-1 == dummy zero vertex, matching torch's wrap-around indexing).
    spiral1 = jax.random.randint(ks[2], (1, V1 + 1, S), -1, V1, dtype=jnp.int32)
    spiral2 = jax.random.randint(ks[3], (1, V2 + 1, S), -1, V2, dtype=jnp.int32)
    spirals = [spiral2, spiral1]       # spirals[-1] used at layer 0

    zs = jax.random.normal(ks[4], (B, nlat_s), jnp.float32)
    zp = jax.random.normal(ks[5], (B, nlat_p), jnp.float32)

    params = init_params(ks[6], dec_filters, spirals, nlat, U)
    plan = build_plan(params, dec_filters, spirals, U)

    try:
        out = spiral_decoder_forward(plan, zs, zp, vectorized_gather=True)
        out = jax.block_until_ready(out)
    except Exception:
        # In-kernel vectorized gather (take_along_axis) not supported by this
        # jax/libtpu build; fall back to the loop-gather kernel (still fused,
        # single-matmul, hoisted upsample, large tiles).
        out = spiral_decoder_forward(plan, zs, zp, vectorized_gather=False)
        out = jax.block_until_ready(out)

    ref = reference_forward(params, zs, zp, dec_filters, spirals, U)
    assert out.shape == (B, V2, dec_filters[-1]), out.shape
    err = float(jnp.max(jnp.abs(out - ref)))
    assert jnp.allclose(out, ref, atol=1e-3, rtol=1e-3), err

    print("KERNEL_OK")
</pallas_src>

<mosaic_0001>
module attributes {stable_mosaic.version = 11 : i64} {
  func.func @_fc_kernel(%arg0: i32, %arg1: memref<2x16xf32, #tpu.memory_space<vmem>>, %arg2: memref<16x256xf32, #tpu.memory_space<vmem>>, %arg3: memref<1x256xf32, #tpu.memory_space<vmem>>, %arg4: memref<2x256xf32, #tpu.memory_space<vmem>>) attributes {dimension_semantics = [#tpu.dimension_semantics<arbitrary>], iteration_bounds = array<i64: 1>, scalar_prefetch = 0 : i64, scratch_operands = 0 : i64, tpu.core_type = #tpu.core_type<tc>, window_params = [{pipeline_mode = #tpu.pipeline_mode<synchronous>, transform_indices = @transform_0, window_bounds = array<i64: 2, 16>}, {pipeline_mode = #tpu.pipeline_mode<synchronous>, transform_indices = @transform_1, window_bounds = array<i64: 16, 256>}, {pipeline_mode = #tpu.pipeline_mode<synchronous>, transform_indices = @transform_2, window_bounds = array<i64: 1, 256>}, {pipeline_mode = #tpu.pipeline_mode<synchronous>, transform_indices = @transform_3, window_bounds = array<i64: 2, 256>}]} {
    %c0 = arith.constant 0 : index
    %c0_0 = arith.constant 0 : index
    %0 = vector.load %arg1[%c0, %c0_0] : memref<2x16xf32, #tpu.memory_space<vmem>>, vector<2x16xf32>
    %c0_1 = arith.constant 0 : index
    %c0_2 = arith.constant 0 : index
    %1 = vector.load %arg2[%c0_1, %c0_2] : memref<16x256xf32, #tpu.memory_space<vmem>>, vector<16x256xf32>
    %cst = arith.constant dense<0.000000e+00> : vector<2x256xf32>
    %2 = tpu.matmul %0, %1, %cst {dimension_numbers = #tpu.dot_dimension_numbers<[1], [0], [0], [1], [0, 0, 1, 1], [], []>} : vector<2x16xf32>, vector<16x256xf32>, vector<2x256xf32> -> vector<2x256xf32>
    %c0_3 = arith.constant 0 : index
    %c0_4 = arith.constant 0 : index
    %3 = vector.load %arg3[%c0_3, %c0_4] : memref<1x256xf32, #tpu.memory_space<vmem>>, vector<1x256xf32>
    %4 = vector.broadcast %3 : vector<1x256xf32> to vector<2x256xf32>
    %5 = arith.addf %2, %4 : vector<2x256xf32>
    %c0_5 = arith.constant 0 : index
    %c0_6 = arith.constant 0 : index
    %6 = vector.load %arg4[%c0_5, %c0_6] : memref<2x256xf32, #tpu.memory_space<vmem>>, vector<2x256xf32>
    tpu.vector_store %arg4[%c0_5, %c0_6], %5 {strides = array<i32>} : memref<2x256xf32, #tpu.memory_space<vmem>>, vector<2x256xf32>,
    return
  }
  func.func @transform_0(%arg0: i32) -> (i32, i32) {
    %c0_i32 = arith.constant 0 : i32
    %c0_i32_0 = arith.constant 0 : i32
    %c0_i32_1 = arith.constant 0 : i32
    return %c0_i32, %c0_i32_0 : i32, i32
  }
  func.func @transform_1(%arg0: i32) -> (i32, i32) {
    %c0_i32 = arith.constant 0 : i32
    %c0_i32_0 = arith.constant 0 : i32
    %c0_i32_1 = arith.constant 0 : i32
    return %c0_i32, %c0_i32_0 : i32, i32
  }
  func.func @transform_2(%arg0: i32) -> (i32, i32) {
    %c0_i32 = arith.constant 0 : i32
    %c0_i32_0 = arith.constant 0 : i32
    %c0_i32_1 = arith.constant 0 : i32
    return %c0_i32, %c0_i32_0 : i32, i32
  }
  func.func @transform_3(%arg0: i32) -> (i32, i32) {
    %c0_i32 = arith.constant 0 : i32
    %c0_i32_0 = arith.constant 0 : i32
    %c0_i32_1 = arith.constant 0 : i32
    return %c0_i32, %c0_i32_0 : i32, i32
  }
}

module attributes {stable_mosaic.version = 11 : i64} {
  func.func @_fc_kernel(%arg0: i32, %arg1: memref<2x16xf32, #tpu.memory_space<vmem>>, %arg2: memref<16x256xf32, #tpu.memory_space<vmem>>, %arg3: memref<1x256xf32, #tpu.memory_space<vmem>>, %arg4: memref<2x256xf32, #tpu.memory_space<vmem>>) attributes {dimension_semantics = [#tpu.dimension_semantics<arbitrary>], iteration_bounds = array<i64: 1>, scalar_prefetch = 0 : i64, scratch_operands = 0 : i64, tpu.core_type = #tpu.core_type<tc>, window_params = [{pipeline_mode = #tpu.pipeline_mode<synchronous>, transform_indices = @transform_0, window_bounds = array<i64: 2, 16>}, {pipeline_mode = #tpu.pipeline_mode<synchronous>, transform_indices = @transform_1, window_bounds = array<i64: 16, 256>}, {pipeline_mode = #tpu.pipeline_mode<synchronous>, transform_indices = @transform_2, window_bounds = array<i64: 1, 256>}, {pipeline_mode = #tpu.pipeline_mode<synchronous>, transform_indices = @transform_3, window_bounds = array<i64: 2, 256>}]} {
    %c0 = arith.constant 0 : index
    %c0_0 = arith.constant 0 : index
    %0 = vector.load %arg1[%c0, %c0_0] : memref<2x16xf32, #tpu.memory_space<vmem>>, vector<2x16xf32>
    %c0_1 = arith.constant 0 : index
    %c0_2 = arith.constant 0 : index
    %1 = vector.load %arg2[%c0_1, %c0_2] : memref<16x256xf32, #tpu.memory_space<vmem>>, vector<16x256xf32>
    %cst = arith.constant dense<0.000000e+00> : vector<2x256xf32>
    %2 = tpu.matmul %0, %1, %cst {dimension_numbers = #tpu.dot_dimension_numbers<[1], [0], [0], [1], [0, 0, 1, 1], [], []>} : vector<2x16xf32>, vector<16x256xf32>, vector<2x256xf32> -> vector<2x256xf32>
    %c0_3 = arith.constant 0 : index
    %c0_4 = arith.constant 0 : index
    %3 = vector.load %arg3[%c0_3, %c0_4] : memref<1x256xf32, #tpu.memory_space<vmem>>, vector<1x256xf32>
    %4 = vector.broadcast %3 : vector<1x256xf32> to vector<2x256xf32>
    %5 = arith.addf %2, %4 : vector<2x256xf32>
    %c0_5 = arith.constant 0 : index
    %c0_6 = arith.constant 0 : index
    %6 = vector.load %arg4[%c0_5, %c0_6] : memref<2x256xf32, #tpu.memory_space<vmem>>, vector<2x256xf32>
    tpu.vector_store %arg4[%c0_5, %c0_6], %5 {strides = array<i32>} : memref<2x256xf32, #tpu.memory_space<vmem>>, vector<2x256xf32>,
    return
  }
  func.func @transform_0(%arg0: i32) -> (i32, i32) {
    %c0_i32 = arith.constant 0 : i32
    %c0_i32_0 = arith.constant 0 : i32
    %c0_i32_1 = arith.constant 0 : i32
    return %c0_i32, %c0_i32_0 : i32, i32
  }
  func.func @transform_1(%arg0: i32) -> (i32, i32) {
    %c0_i32 = arith.constant 0 : i32
    %c0_i32_0 = arith.constant 0 : i32
    %c0_i32_1 = arith.constant 0 : i32
    return %c0_i32, %c0_i32_0 : i32, i32
  }
  func.func @transform_2(%arg0: i32) -> (i32, i32) {
    %c0_i32 = arith.constant 0 : i32
    %c0_i32_0 = arith.constant 0 : i32
    %c0_i32_1 = arith.constant 0 : i32
    return %c0_i32, %c0_i32_0 : i32, i32
  }
  func.func @transform_3(%arg0: i32) -> (i32, i32) {
    %c0_i32 = arith.constant 0 : i32
    %c0_i32_0 = arith.constant 0 : i32
    %c0_i32_1 = arith.constant 0 : i32
    return %c0_i32, %c0_i32_0 : i32, i32
  }
}

</mosaic_0001>

<llo_original>
// kernel: tpu_custom_call.1
$region0: #{tpu_custom_call.1}
  #allocation0 [shape = 'u32[]', space=smem, size = 0x4, offset = 0x4, fixed_abs, tag = 'smem constant byte address 0x4 - core index']
  #allocation1 [shape = 'u32[144,128]{1,0:T(1,128)}', space=vmem, size = 0x12000, scoped, tag = 'internal scratch']
  %s0 = inlined_call_operand.hbm [shape: f32[2,16], index: 0, kind: input, shape index: {}]
  %s1 = inlined_call_operand.hbm [shape: f32[16,256], index: 1, kind: input, shape index: {}]
  %s2 = inlined_call_operand.vmem [shape: f32[1,256], index: 2, kind: input, shape index: {}]
  %s3 = inlined_call_operand.hbm [shape: f32[2,256], index: 3, kind: output, shape index: {}]
  %s4 = sld [smem:[#allocation0]]
  $region30: #{tpu_custom_call.1} parent=0
    _
  %s6 = ssub.s32 1, %s4
  %s7 = scalar_select 0, %s6, %s4
  $region1: #{tpu_custom_call.1} parent=0
    #allocation2 [shape = 'u8[1024]{0}', space=vmem, size = 0x400, scoped, tag = 'input window, operand 0, single buffered']
    #allocation3 [shape = 's32[1]{0}', space=sflag, size = 0x4, scoped, tag = 'scoped memory for tpu_custom_call.1']
    #allocation4 [shape = 's32[1]{0}', space=sflag, size = 0x4, scoped, tag = 'scoped memory for tpu_custom_call.1']
    #allocation5 [shape = 'u8[16384]{0}', space=vmem, size = 0x4000, scoped, tag = 'input window, operand 1, single buffered']
    #allocation6 [shape = 's32[1]{0}', space=sflag, size = 0x4, scoped, tag = 'scoped memory for tpu_custom_call.1']
    #allocation7 [shape = 'u8[2048]{0}', space=vmem, size = 0x800, scoped, tag = 'output window, operand 0, single buffered']
    %8 = vsyncpa [#allocation3], 0
    %9 = vsyncpa [#allocation6], 0
    %10 = vsyncpa [#allocation4], 0
    // Predicated region
    $region2: #{tpu_custom_call.1} parent=1 // pred_check
      _
    $region3: #{tpu_custom_call.1} parent=1 // pred_check_branch
      %12 = sbr.rel (0) target = $region5
    $region4: #{tpu_custom_call.1} parent=1 // pred_region
      %s14 = ssub.s32 32, 32
      %15 = vsyncadd [#allocation3], %s14
      %s17 = sshll.u32 [#allocation2], 4
      %s18 = int_to_ptr.vmem [resolvable:$true] %s17
      %20 = dma.hbm_to_vmem [thread:$0]  %s0, 32, %s18, [#allocation3]
    $region5: #{tpu_custom_call.1} parent=1 // pred_fallthru
      _
    // Predicated region
    $region6: #{tpu_custom_call.1} parent=1 // pred_check
      _
    $region7: #{tpu_custom_call.1} parent=1 // pred_check_branch
      %22 = sbr.rel (0) target = $region9
    $region8: #{tpu_custom_call.1} parent=1 // pred_region
      %s24 = ssub.s32 512, 512
      %25 = vsyncadd [#allocation6], %s24
      %s26 = sshll.u32 [#allocation5], 4
      %s27 = int_to_ptr.vmem [resolvable:$true] %s26
      %32 = dma.hbm_to_vmem [thread:$0]  %s1, 512, %s27, [#allocation6], 256, 256, 16
    $region9: #{tpu_custom_call.1} parent=1 // pred_fallthru
      _
    // Predicated region
    $region10: #{tpu_custom_call.1} parent=1 // pred_check
      _
    $region11: #{tpu_custom_call.1} parent=1 // pred_check_branch
      %34 = sbr.rel (0) target = $region13
    $region12: #{tpu_custom_call.1} parent=1 // pred_region
      _
    $region13: #{tpu_custom_call.1} parent=1 // pred_fallthru
      _
    // Predicated region
    $region14: #{tpu_custom_call.1} parent=1 // pred_check
      _
    $region15: #{tpu_custom_call.1} parent=1 // pred_check_branch
      %36 = sbr.rel (0) target = $region17
    $region16: #{tpu_custom_call.1} parent=1 // pred_region
      %37 = dma.done [#allocation3], 32
    $region17: #{tpu_custom_call.1} parent=1 // pred_fallthru
      _
    // Predicated region
    $region18: #{tpu_custom_call.1} parent=1 // pred_check
      _
    $region19: #{tpu_custom_call.1} parent=1 // pred_check_branch
      %39 = sbr.rel (0) target = $region21
    $region20: #{tpu_custom_call.1} parent=1 // pred_region
      %40 = dma.done [#allocation6], 512
    $region21: #{tpu_custom_call.1} parent=1 // pred_fallthru
      _
    %v41 = vld [vmem:[#allocation2] sm:$0x3]
    %v42 = vld [vmem:[#allocation5] sm:$0xff]
    %v43 = vld [vmem:[#allocation5 + $0x8] sm:$0xff]
    %v44 = vld [vmem:[#allocation5 + $0x10] sm:$0xff]
    %v45 = vld [vmem:[#allocation5 + $0x18] sm:$0xff]
    %v46 = vld [vmem:[%s2] sm:$0x3]
    %v48 = vlaneseq
    %v49 = vshrl.u32 %v48, 7
    %v50 = vsub.s32 0, %v49
    %v51 = vrot.slane %v46, %v50
    %v52 = vlaneseq
    %v53 = vshrl.u32 %v52, 7
    %v54 = vsub.s32 1, %v53
    %v55 = vrot.slane %v46, %v54
    %vm58 = vcmask 130048
    %v60 = vsel %vm58, %v41, 0
    %62 = vmatprep.subr.mxu0 0.0
    %63 = vmatpush1.msra.mxu0 0.0
    %64 = vmatprep.subr.mxu0 0.0
    %65 = vmatpush1.msra.mxu0 0.0
    %66 = vmatprep.subr.mxu0 0.0
    %67 = vmatpush1.msra.mxu0 0.0
    %68 = vmatprep.subr.mxu0 0.0
    %69 = vmatpush1.msra.mxu0 0.0
    %70 = vmatprep.subr.mxu0 0.0
    %71 = vmatpush1.msra.mxu0 0.0
    %72 = vmatprep.subr.mxu0 0.0
    %73 = vmatpush1.msra.mxu0 0.0
    %74 = vmatprep.subr.mxu0 0.0
    %75 = vmatpush1.msra.mxu0 0.0
    %76 = vmatprep.subr.mxu0 0.0
    %77 = vmatpush1.msra.mxu0 0.0
    %78 = vmatprep.subr.mxu0 0.0
    %79 = vmatpush1.msra.mxu0 0.0
    %80 = vmatprep.subr.mxu0 0.0
    %81 = vmatpush1.msra.mxu0 0.0
    %82 = vmatprep.subr.mxu0 0.0
    %83 = vmatpush1.msra.mxu0 0.0
    %84 = vmatprep.subr.mxu0 0.0
    %85 = vmatpush1.msra.mxu0 0.0
    %86 = vmatprep.subr.mxu0 0.0
    %87 = vmatpush1.msra.mxu0 0.0
    %88 = vmatprep.subr.mxu0 0.0
    %89 = vmatpush1.msra.mxu0 0.0
    %90 = vmatprep.subr.mxu0 %v45
    %91 = vmatpush1.msra.mxu0 %v44
    %92 = vmatprep.subr.mxu0 %v43
    %93 = vmatpush1.msra.mxu0 %v42
    %94 = vmatprep.subr.mxu0 0.0
    %95 = vmatpush2.msra.mxu0 0.0
    %96 = vmatprep.subr.mxu0 0.0
    %97 = vmatpush2.msra.mxu0 0.0
    %98 = vmatprep.subr.mxu0 0.0
    %99 = vmatpush2.msra.mxu0 0.0
    %100 = vmatprep.subr.mxu0 0.0
    %101 = vmatpush2.msra.mxu0 0.0
    %102 = vmatprep.subr.mxu0 0.0
    %103 = vmatpush2.msra.mxu0 0.0
    %104 = vmatprep.subr.mxu0 0.0
    %105 = vmatpush2.msra.mxu0 0.0
    %106 = vmatprep.subr.mxu0 0.0
    %107 = vmatpush2.msra.mxu0 0.0
    %108 = vmatprep.subr.mxu0 0.0
    %109 = vmatpush2.msra.mxu0 0.0
    %110 = vmatprep.subr.mxu0 0.0
    %111 = vmatpush2.msra.mxu0 0.0
    %112 = vmatprep.subr.mxu0 0.0
    %113 = vmatpush2.msra.mxu0 0.0
    %114 = vmatprep.subr.mxu0 0.0
    %115 = vmatpush2.msra.mxu0 0.0
    %116 = vmatprep.subr.mxu0 0.0
    %117 = vmatpush2.msra.mxu0 0.0
    %118 = vmatprep.subr.mxu0 0.0
    %119 = vmatpush2.msra.mxu0 0.0
    %120 = vmatprep.subr.mxu0 0.0
    %121 = vmatpush2.msra.mxu0 0.0
    %122 = vmatprep.subr.mxu0 0.0
    %123 = vmatpush2.msra.mxu0 0.0
    %124 = vmatprep.subr.mxu0 0.0
    %125 = vmatpush2.msra.mxu0 0.0
    %126 = vmatprep.mubr.f32.mxu0 0.0
    %127 = vmatmul.mubr.f32.gmra.mxu0 %v60
    %v128 = vpop.f32.mrf.mxu0
    %v129 = vadd.f32 %v51, %v128
    %v130 = vpop.f32.mrf.mxu0
    %v131 = vadd.f32 %v55, %v130
    %132 = vdwg.mxu0
    %v135 = vcombine.low %v129, %v131
    %v137 = vunpack.c.l.s4 1983009808
    %v138 = vunpack.c.0.s8 %v137
    %v139 = vlaneseq
    %v140 = vshrl.u32 %v139, 7
    %v141 = vsub.s32 %v138, %v140
    %v142 = vrot.slane %v135, %v141
    %144 = vst [vmem:[#allocation7] sm:$0xf] %v142
    // Predicated region
    $region22: #{tpu_custom_call.1} parent=1 // pred_check
      _
    $region23: #{tpu_custom_call.1} parent=1 // pred_check_branch
      %146 = sbr.rel (0) target = $region25
    $region24: #{tpu_custom_call.1} parent=1 // pred_region
      %s148 = ssub.s32 64, 64
      %149 = vsyncadd [#allocation4], %s148
      %s151 = sshll.u32 [#allocation7], 4
      %s152 = int_to_ptr.vmem [resolvable:$true] %s151
      %154 = dma.vmem_to_hbm [thread:$0]  %s152, 64, %s3, [#allocation4]
    $region25: #{tpu_custom_call.1} parent=1 // pred_fallthru
      _
    // Predicated region
    $region26: #{tpu_custom_call.1} parent=1 // pred_check
      _
    $region27: #{tpu_custom_call.1} parent=1 // pred_check_branch
      %156 = sbr.rel (0) target = $region29
    $region28: #{tpu_custom_call.1} parent=1 // pred_region
      %157 = dma.done [#allocation4], 64
    $region29: #{tpu_custom_call.1} parent=1 // pred_fallthru
      _
    %158 = vsyncpa [#allocation3], 1
    %159 = vsyncpa [#allocation6], 1
    %160 = vsyncpa [#allocation4], 1

// kernel: tpu_custom_call.1
$region0: #{tpu_custom_call.1}
  #allocation0 [shape = 'u32[]', space=smem, size = 0x4, offset = 0x4, fixed_abs, tag = 'smem constant byte address 0x4 - core index']
  #allocation1 [shape = 'u32[144,128]{1,0:T(1,128)}', space=vmem, size = 0x12000, scoped, tag = 'internal scratch']
  %s0 = inlined_call_operand.hbm [shape: f32[2,16], index: 0, kind: input, shape index: {}]
  %s1 = inlined_call_operand.hbm [shape: f32[16,256], index: 1, kind: input, shape index: {}]
  %s2 = inlined_call_operand.vmem [shape: f32[1,256], index: 2, kind: input, shape index: {}]
  %s3 = inlined_call_operand.hbm [shape: f32[2,256], index: 3, kind: output, shape index: {}]
  %s4 = sld [smem:[#allocation0]]
  $region30: #{tpu_custom_call.1} parent=0
    _
  %s6 = ssub.s32 1, %s4
  %s7 = scalar_select 0, %s6, %s4
  $region1: #{tpu_custom_call.1} parent=0
    #allocation2 [shape = 'u8[1024]{0}', space=vmem, size = 0x400, scoped, tag = 'input window, operand 0, single buffered']
    #allocation3 [shape = 's32[1]{0}', space=sflag, size = 0x4, scoped, tag = 'scoped memory for tpu_custom_call.1']
    #allocation4 [shape = 's32[1]{0}', space=sflag, size = 0x4, scoped, tag = 'scoped memory for tpu_custom_call.1']
    #allocation5 [shape = 'u8[16384]{0}', space=vmem, size = 0x4000, scoped, tag = 'input window, operand 1, single buffered']
    #allocation6 [shape = 's32[1]{0}', space=sflag, size = 0x4, scoped, tag = 'scoped memory for tpu_custom_call.1']
    #allocation7 [shape = 'u8[2048]{0}', space=vmem, size = 0x800, scoped, tag = 'output window, operand 0, single buffered']
    %8 = vsyncpa [#allocation3], 0
    %9 = vsyncpa [#allocation6], 0
    %10 = vsyncpa [#allocation4], 0
    // Predicated region
    $region2: #{tpu_custom_call.1} parent=1 // pred_check
      _
    $region3: #{tpu_custom_call.1} parent=1 // pred_check_branch
      %12 = sbr.rel (0) target = $region5
    $region4: #{tpu_custom_call.1} parent=1 // pred_region
      %s14 = ssub.s32 32, 32
      %15 = vsyncadd [#allocation3], %s14
      %s17 = sshll.u32 [#allocation2], 4
      %s18 = int_to_ptr.vmem [resolvable:$true] %s17
      %20 = dma.hbm_to_vmem [thread:$0]  %s0, 32, %s18, [#allocation3]
    $region5: #{tpu_custom_call.1} parent=1 // pred_fallthru
      _
    // Predicated region
    $region6: #{tpu_custom_call.1} parent=1 // pred_check
      _
    $region7: #{tpu_custom_call.1} parent=1 // pred_check_branch
      %22 = sbr.rel (0) target = $region9
    $region8: #{tpu_custom_call.1} parent=1 // pred_region
      %s24 = ssub.s32 512, 512
      %25 = vsyncadd [#allocation6], %s24
      %s26 = sshll.u32 [#allocation5], 4
      %s27 = int_to_ptr.vmem [resolvable:$true] %s26
      %32 = dma.hbm_to_vmem [thread:$0]  %s1, 512, %s27, [#allocation6], 256, 256, 16
    $region9: #{tpu_custom_call.1} parent=1 // pred_fallthru
      _
    // Predicated region
    $region10: #{tpu_custom_call.1} parent=1 // pred_check
      _
    $region11: #{tpu_custom_call.1} parent=1 // pred_check_branch
      %34 = sbr.rel (0) target = $region13
    $region12: #{tpu_custom_call.1} parent=1 // pred_region
      _
    $region13: #{tpu_custom_call.1} parent=1 // pred_fallthru
      _
    // Predicated region
    $region14: #{tpu_custom_call.1} parent=1 // pred_check
      _
    $region15: #{tpu_custom_call.1} parent=1 // pred_check_branch
      %36 = sbr.rel (0) target = $region17
    $region16: #{tpu_custom_call.1} parent=1 // pred_region
      %37 = dma.done [#allocation3], 32
    $region17: #{tpu_custom_call.1} parent=1 // pred_fallthru
      _
    // Predicated region
    $region18: #{tpu_custom_call.1} parent=1 // pred_check
      _
    $region19: #{tpu_custom_call.1} parent=1 // pred_check_branch
      %39 = sbr.rel (0) target = $region21
    $region20: #{tpu_custom_call.1} parent=1 // pred_region
      %40 = dma.done [#allocation6], 512
    $region21: #{tpu_custom_call.1} parent=1 // pred_fallthru
      _
    %v41 = vld [vmem:[#allocation2] sm:$0x3]
    %v42 = vld [vmem:[#allocation5] sm:$0xff]
    %v43 = vld [vmem:[#allocation5 + $0x8] sm:$0xff]
    %v44 = vld [vmem:[#allocation5 + $0x10] sm:$0xff]
    %v45 = vld [vmem:[#allocation5 + $0x18] sm:$0xff]
    %v46 = vld [vmem:[%s2] sm:$0x3]
    %v48 = vlaneseq
    %v49 = vshrl.u32 %v48, 7
    %v50 = vsub.s32 0, %v49
    %v51 = vrot.slane %v46, %v50
    %v52 = vlaneseq
    %v53 = vshrl.u32 %v52, 7
    %v54 = vsub.s32 1, %v53
    %v55 = vrot.slane %v46, %v54
    %vm58 = vcmask 130048
    %v60 = vsel %vm58, %v41, 0
    %62 = vmatprep.subr.mxu0 0.0
    %63 = vmatpush1.msra.mxu0 0.0
    %64 = vmatprep.subr.mxu0 0.0
    %65 = vmatpush1.msra.mxu0 0.0
    %66 = vmatprep.subr.mxu0 0.0
    %67 = vmatpush1.msra.mxu0 0.0
    %68 = vmatprep.subr.mxu0 0.0
    %69 = vmatpush1.msra.mxu0 0.0
    %70 = vmatprep.subr.mxu0 0.0
    %71 = vmatpush1.msra.mxu0 0.0
    %72 = vmatprep.subr.mxu0 0.0
    %73 = vmatpush1.msra.mxu0 0.0
    %74 = vmatprep.subr.mxu0 0.0
    %75 = vmatpush1.msra.mxu0 0.0
    %76 = vmatprep.subr.mxu0 0.0
    %77 = vmatpush1.msra.mxu0 0.0
    %78 = vmatprep.subr.mxu0 0.0
    %79 = vmatpush1.msra.mxu0 0.0
    %80 = vmatprep.subr.mxu0 0.0
    %81 = vmatpush1.msra.mxu0 0.0
    %82 = vmatprep.subr.mxu0 0.0
    %83 = vmatpush1.msra.mxu0 0.0
    %84 = vmatprep.subr.mxu0 0.0
    %85 = vmatpush1.msra.mxu0 0.0
    %86 = vmatprep.subr.mxu0 0.0
    %87 = vmatpush1.msra.mxu0 0.0
    %88 = vmatprep.subr.mxu0 0.0
    %89 = vmatpush1.msra.mxu0 0.0
    %90 = vmatprep.subr.mxu0 %v45
    %91 = vmatpush1.msra.mxu0 %v44
    %92 = vmatprep.subr.mxu0 %v43
    %93 = vmatpush1.msra.mxu0 %v42
    %94 = vmatprep.subr.mxu0 0.0
    %95 = vmatpush2.msra.mxu0 0.0
    %96 = vmatprep.subr.mxu0 0.0
    %97 = vmatpush2.msra.mxu0 0.0
    %98 = vmatprep.subr.mxu0 0.0
    %99 = vmatpush2.msra.mxu0 0.0
    %100 = vmatprep.subr.mxu0 0.0
    %101 = vmatpush2.msra.mxu0 0.0
    %102 = vmatprep.subr.mxu0 0.0
    %103 = vmatpush2.msra.mxu0 0.0
    %104 = vmatprep.subr.mxu0 0.0
    %105 = vmatpush2.msra.mxu0 0.0
    %106 = vmatprep.subr.mxu0 0.0
    %107 = vmatpush2.msra.mxu0 0.0
    %108 = vmatprep.subr.mxu0 0.0
    %109 = vmatpush2.msra.mxu0 0.0
    %110 = vmatprep.subr.mxu0 0.0
    %111 = vmatpush2.msra.mxu0 0.0
    %112 = vmatprep.subr.mxu0 0.0
    %113 = vmatpush2.msra.mxu0 0.0
    %114 = vmatprep.subr.mxu0 0.0
    %115 = vmatpush2.msra.mxu0 0.0
    %116 = vmatprep.subr.mxu0 0.0
    %117 = vmatpush2.msra.mxu0 0.0
    %118 = vmatprep.subr.mxu0 0.0
    %119 = vmatpush2.msra.mxu0 0.0
    %120 = vmatprep.subr.mxu0 0.0
    %121 = vmatpush2.msra.mxu0 0.0
    %122 = vmatprep.subr.mxu0 0.0
    %123 = vmatpush2.msra.mxu0 0.0
    %124 = vmatprep.subr.mxu0 0.0
    %125 = vmatpush2.msra.mxu0 0.0
    %126 = vmatprep.mubr.f32.mxu0 0.0
    %127 = vmatmul.mubr.f32.gmra.mxu0 %v60
    %v128 = vpop.f32.mrf.mxu0
    %v129 = vadd.f32 %v51, %v128
    %v130 = vpop.f32.mrf.mxu0
    %v131 = vadd.f32 %v55, %v130
    %132 = vdwg.mxu0
    %v135 = vcombine.low %v129, %v131
    %v137 = vunpack.c.l.s4 1983009808
    %v138 = vunpack.c.0.s8 %v137
    %v139 = vlaneseq
    %v140 = vshrl.u32 %v139, 7
    %v141 = vsub.s32 %v138, %v140
    %v142 = vrot.slane %v135, %v141
    %144 = vst [vmem:[#allocation7] sm:$0xf] %v142
    // Predicated region
    $region22: #{tpu_custom_call.1} parent=1 // pred_check
      _
    $region23: #{tpu_custom_call.1} parent=1 // pred_check_branch
      %146 = sbr.rel (0) target = $region25
    $region24: #{tpu_custom_call.1} parent=1 // pred_region
      %s148 = ssub.s32 64, 64
      %149 = vsyncadd [#allocation4], %s148
      %s151 = sshll.u32 [#allocation7], 4
      %s152 = int_to_ptr.vmem [resolvable:$true] %s151
      %154 = dma.vmem_to_hbm [thread:$0]  %s152, 64, %s3, [#allocation4]
    $region25: #{tpu_custom_call.1} parent=1 // pred_fallthru
      _
    // Predicated region
    $region26: #{tpu_custom_call.1} parent=1 // pred_check
      _
    $region27: #{tpu_custom_call.1} parent=1 // pred_check_branch
      %156 = sbr.rel (0) target = $region29
    $region28: #{tpu_custom_call.1} parent=1 // pred_region
      %157 = dma.done [#allocation4], 64
    $region29: #{tpu_custom_call.1} parent=1 // pred_fallthru
      _
    %158 = vsyncpa [#allocation3], 1
    %159 = vsyncpa [#allocation6], 1
    %160 = vsyncpa [#allocation4], 1

</llo_original>
